<compile_context>
chip_gen: v7x
topology: tpu7x:2x2x1
jax: 0.10.0
libtpu: 0.0.40
codegen_flags: <defaults>
</compile_context>

<pallas_src>
import functools

import jax
import jax.numpy as jnp
from jax.experimental import pallas as pl
from jax.experimental.pallas import tpu as pltpu

LANE = 128     # vreg lane width
SUBLANE = 8    # vreg sublane count (f32)


def _round_up(x, m):
    return (x + m - 1) // m * m


def _cdiv(a, b):
    return -(-a // b)


def _silu(x):
    # SiLU(x) = x * sigmoid(x) = 0.5 * x * (1 + tanh(0.5 * x)).
    # One EUP transcendental (tanh); the muls/adds go to the VALU slots.
    return 0.5 * x * (1.0 + jnp.tanh(0.5 * x))


def _default_act_dtype():
    """bf16 elementwise on v6e/v7x (bf16 VPU/EUP); f32 on older generations."""
    try:
        kind = jax.devices()[0].device_kind.lower()
    except Exception:  # pragma: no cover - defensive
        return jnp.float32
    for old in ("v2", "v3", "v4", "v5"):
        if old in kind:
            return jnp.float32
    return jnp.bfloat16


def mlp_kernel(u_ref, t_ref,
               w1u_ref, w1t_ref, b1_ref,
               w2_ref, b2_ref,
               w3_ref, b3_ref,
               w4_ref, b4_ref,
               w5_ref, b5_ref,
               out_ref, *, act_dtype):
    u = u_ref[...].astype(jnp.float32)            # (TILE_B, input_dim)
    t = t_ref[...].astype(jnp.float32)            # (TILE_B, 1)

    # Layer 1 with the [u, t] concat folded in:
    #   [u, t] @ W1 + b1 == u @ W1[:input_dim] + t * W1[input_dim:] + b1
    # For tiny input_dim the u-matmul is folded into VPU broadcast FMAs
    # (an MXU push for K=4 would run the systolic array ~97% empty).
    x = t * w1t_ref[...] + b1_ref[...]            # (TILE_B, H) f32
    in_dim = u_ref.shape[1]
    if in_dim <= 8:
        w1u = w1u_ref[...].astype(jnp.float32)    # (in_dim, H)
        for k in range(in_dim):
            x = x + u[:, k:k + 1] * w1u[k:k + 1, :]
    else:
        x = x + jnp.dot(u.astype(jnp.bfloat16),
                        w1u_ref[...].astype(jnp.bfloat16),
                        preferred_element_type=jnp.float32)
    x = _silu(x.astype(act_dtype))

    def dense(a, w_ref, b_ref):
        # bf16 operands into the MXU, f32 accumulation, f32 bias add.
        return jnp.dot(a.astype(jnp.bfloat16), w_ref[...],
                       preferred_element_type=jnp.float32) + b_ref[...]

    x = _silu(dense(x, w2_ref, b2_ref).astype(act_dtype))
    x = _silu(dense(x, w3_ref, b3_ref).astype(act_dtype))
    x = _silu(dense(x, w4_ref, b4_ref).astype(act_dtype))
    out = dense(x, w5_ref, b5_ref)                # final layer: no activation

    out_ref[...] = out.astype(out_ref.dtype)


def init_mlp_params(key, input_dim, out_dim, hidden_dim=128, dtype=jnp.float32):
    """Deterministic init mimicking nn.Linear (uniform in +-1/sqrt(fan_in))."""
    in_dim = input_dim + 1
    dims = [(in_dim, hidden_dim), (hidden_dim, hidden_dim),
            (hidden_dim, hidden_dim), (hidden_dim, hidden_dim),
            (hidden_dim, out_dim)]
    params = []
    for (fan_in, fan_out) in dims:
        key, kw, kb = jax.random.split(key, 3)
        bound = 1.0 / jnp.sqrt(float(fan_in))
        # stored as (in, out) = transpose of PyTorch's (out, in) weight
        w = jax.random.uniform(kw, (fan_in, fan_out), dtype, -bound, bound)
        b = jax.random.uniform(kb, (1, fan_out), dtype, -bound, bound)
        params.append((w, b))
    return params


@functools.partial(jax.jit, static_argnames=("tile_b", "act_dtype"))
def mlp_forward(u, t, params, *, tile_b=2048, act_dtype=None):
    """Forward pass of MLP(u, t). u: (B, input_dim), t: (B,)."""
    if act_dtype is None:
        act_dtype = _default_act_dtype()

    B, input_dim = u.shape
    (w1, b1), (w2, b2), (w3, b3), (w4, b4), (w5, b5) = params
    hidden = w1.shape[1]
    out_dim = w5.shape[1]

    # Split layer-1 weight so the [u, t] concat never materializes in HBM.
    # Layer-1 pieces stay f32 (they feed VPU FMAs); layers 2-5 go bf16 for the MXU.
    w1u = w1[:input_dim].astype(jnp.float32)      # (input_dim, hidden)
    w1t = w1[input_dim:].astype(jnp.float32)      # (1, hidden)
    b1 = b1.astype(jnp.float32)

    # Pad the output feature dim to a full 128-lane vreg -> lane-dense stores.
    out_pad = _round_up(out_dim, LANE)
    if out_pad != out_dim:
        w5 = jnp.pad(w5, ((0, 0), (0, out_pad - out_dim)))
        b5 = jnp.pad(b5, ((0, 0), (0, out_pad - out_dim)))

    w2 = w2.astype(jnp.bfloat16)
    w3 = w3.astype(jnp.bfloat16)
    w4 = w4.astype(jnp.bfloat16)
    w5 = w5.astype(jnp.bfloat16)
    b2 = b2.astype(jnp.float32)
    b3 = b3.astype(jnp.float32)
    b4 = b4.astype(jnp.float32)
    b5 = b5.astype(jnp.float32)

    # Batch tiling. tile_b rows per grid step; per-step VMEM at tb=2048 is only
    # a few MiB (double-buffered u/out tiles + a couple of (tb,128) activations
    # + ~0.2 MiB weights), comfortably inside v7x's 32 MiB default scoped VMEM.
    # Use >=2 (and an even number of) grid steps when the batch allows so the
    # "parallel" axis keeps both v7x TensorCores busy.
    b_req = _round_up(B, SUBLANE)
    n_tiles = max(1, _cdiv(b_req, tile_b))
    if b_req >= 2 * SUBLANE:
        n_tiles = max(2, n_tiles)
        if n_tiles % 2:
            n_tiles += 1
    tb = _round_up(_cdiv(b_req, n_tiles), SUBLANE)
    b_pad = tb * n_tiles

    if b_pad != B:
        u = jnp.pad(u, ((0, b_pad - B), (0, 0)))
        t = jnp.pad(t, (0, b_pad - B))
    t2 = t.reshape(b_pad, 1)

    def batch_spec(feat):
        return pl.BlockSpec((tb, feat), lambda i: (i, 0))

    def resident_spec(a):
        # Constant index_map -> the block never changes, stays VMEM-resident.
        return pl.BlockSpec(a.shape, lambda i: (0, 0))

    weights = [w1u, w1t, b1, w2, b2, w3, b3, w4, b4, w5, b5]

    flops = 2 * b_pad * ((input_dim + 1) * hidden + 3 * hidden * hidden
                         + hidden * out_pad)
    transcendentals = 4 * b_pad * hidden                 # one tanh per SiLU elem
    bytes_accessed = (u.size * u.dtype.itemsize
                      + t2.size * t2.dtype.itemsize
                      + b_pad * out_pad * 4
                      + sum(w.size * w.dtype.itemsize for w in weights))

    out = pl.pallas_call(
        functools.partial(mlp_kernel, act_dtype=act_dtype),
        out_shape=jax.ShapeDtypeStruct((b_pad, out_pad), jnp.float32),
        grid=(n_tiles,),
        in_specs=[batch_spec(input_dim), batch_spec(1)]
                 + [resident_spec(w) for w in weights],
        out_specs=pl.BlockSpec((tb, out_pad), lambda i: (i, 0)),
        compiler_params=pltpu.CompilerParams(
            dimension_semantics=("parallel",)),
        cost_estimate=pl.CostEstimate(
            flops=flops,
            transcendentals=transcendentals,
            bytes_accessed=bytes_accessed),
    )(u, t2, *weights)

    # Only pay for a slice when padding was actually applied.
    if b_pad == B and out_pad == out_dim:
        return out
    return out[:B, :out_dim]


def mlp_reference(u, t, params):
    h = jnp.concatenate([u, t.reshape(-1, 1)], axis=1)
    x = h
    for i, (w, b) in enumerate(params):
        x = x @ w + b
        if i < len(params) - 1:
            x = x * jax.nn.sigmoid(x)
    return x


if __name__ == "__main__":
    key = jax.random.PRNGKey(0)
    k_u, k_t, k_p = jax.random.split(key, 3)

    B = 8
    input_dim = 4
    out_dim = 4
    hidden_dim = 128   # module default; lane-dense (multiple of 128)

    u = jax.random.normal(k_u, (B, input_dim), jnp.float32)
    t = jax.random.uniform(k_t, (B,), jnp.float32)

    params = init_mlp_params(k_p, input_dim, out_dim, hidden_dim)

    out = mlp_forward(u, t, params)
    out = jax.block_until_ready(out)

    ref = mlp_reference(u, t, params)
    assert out.shape == (B, out_dim)
    # bf16 MXU operands (+ bf16 elementwise on v6e/v7x), f32 accumulation:
    # relative error ~1e-3 per layer -> relaxed tolerance vs the f32 reference.
    assert jnp.allclose(out, ref, atol=2e-2, rtol=2e-2), "mismatch vs reference"

    print("KERNEL_OK")
</pallas_src>

<mosaic_0001>
module attributes {stable_mosaic.version = 11 : i64} {
  func.func @mlp_kernel(%arg0: i32, %arg1: memref<8x4xf32, #tpu.memory_space<vmem>>, %arg2: memref<8x1xf32, #tpu.memory_space<vmem>>, %arg3: memref<4x128xf32, #tpu.memory_space<vmem>>, %arg4: memref<1x128xf32, #tpu.memory_space<vmem>>, %arg5: memref<1x128xf32, #tpu.memory_space<vmem>>, %arg6: memref<128x128xbf16, #tpu.memory_space<vmem>>, %arg7: memref<1x128xf32, #tpu.memory_space<vmem>>, %arg8: memref<128x128xbf16, #tpu.memory_space<vmem>>, %arg9: memref<1x128xf32, #tpu.memory_space<vmem>>, %arg10: memref<128x128xbf16, #tpu.memory_space<vmem>>, %arg11: memref<1x128xf32, #tpu.memory_space<vmem>>, %arg12: memref<128x128xbf16, #tpu.memory_space<vmem>>, %arg13: memref<1x128xf32, #tpu.memory_space<vmem>>, %arg14: memref<8x128xf32, #tpu.memory_space<vmem>>) attributes {dimension_semantics = [#tpu.dimension_semantics<parallel>], iteration_bounds = array<i64: 1>, scalar_prefetch = 0 : i64, scratch_operands = 0 : i64, tpu.core_type = #tpu.core_type<tc>, window_params = [{transform_indices = @transform_0, window_bounds = array<i64: 8, 4>}, {transform_indices = @transform_1, window_bounds = array<i64: 8, 1>}, {pipeline_mode = #tpu.pipeline_mode<synchronous>, transform_indices = @transform_2, window_bounds = array<i64: 4, 128>}, {pipeline_mode = #tpu.pipeline_mode<synchronous>, transform_indices = @transform_3, window_bounds = array<i64: 1, 128>}, {pipeline_mode = #tpu.pipeline_mode<synchronous>, transform_indices = @transform_4, window_bounds = array<i64: 1, 128>}, {pipeline_mode = #tpu.pipeline_mode<synchronous>, transform_indices = @transform_5, window_bounds = array<i64: 128, 128>}, {pipeline_mode = #tpu.pipeline_mode<synchronous>, transform_indices = @transform_6, window_bounds = array<i64: 1, 128>}, {pipeline_mode = #tpu.pipeline_mode<synchronous>, transform_indices = @transform_7, window_bounds = array<i64: 128, 128>}, {pipeline_mode = #tpu.pipeline_mode<synchronous>, transform_indices = @transform_8, window_bounds = array<i64: 1, 128>}, {pipeline_mode = #tpu.pipeline_mode<synchronous>, transform_indices = @transform_9, window_bounds = array<i64: 128, 128>}, {pipeline_mode = #tpu.pipeline_mode<synchronous>, transform_indices = @transform_10, window_bounds = array<i64: 1, 128>}, {pipeline_mode = #tpu.pipeline_mode<synchronous>, transform_indices = @transform_11, window_bounds = array<i64: 128, 128>}, {pipeline_mode = #tpu.pipeline_mode<synchronous>, transform_indices = @transform_12, window_bounds = array<i64: 1, 128>}, {transform_indices = @transform_13, window_bounds = array<i64: 8, 128>}]} {
    %c0 = arith.constant 0 : index
    %c0_0 = arith.constant 0 : index
    %0 = vector.load %arg1[%c0, %c0_0] : memref<8x4xf32, #tpu.memory_space<vmem>>, vector<8x4xf32>
    %c0_1 = arith.constant 0 : index
    %c0_2 = arith.constant 0 : index
    %1 = vector.load %arg2[%c0_1, %c0_2] : memref<8x1xf32, #tpu.memory_space<vmem>>, vector<8x1xf32>
    %c0_3 = arith.constant 0 : index
    %c0_4 = arith.constant 0 : index
    %2 = vector.load %arg4[%c0_3, %c0_4] : memref<1x128xf32, #tpu.memory_space<vmem>>, vector<1x128xf32>
    %3 = vector.broadcast %1 : vector<8x1xf32> to vector<8x128xf32>
    %4 = vector.broadcast %2 : vector<1x128xf32> to vector<8x128xf32>
    %5 = arith.mulf %3, %4 : vector<8x128xf32>
    %c0_5 = arith.constant 0 : index
    %c0_6 = arith.constant 0 : index
    %6 = vector.load %arg5[%c0_5, %c0_6] : memref<1x128xf32, #tpu.memory_space<vmem>>, vector<1x128xf32>
    %7 = vector.broadcast %6 : vector<1x128xf32> to vector<8x128xf32>
    %8 = arith.addf %5, %7 : vector<8x128xf32>
    %c0_7 = arith.constant 0 : index
    %c0_8 = arith.constant 0 : index
    %9 = vector.load %arg3[%c0_7, %c0_8] : memref<4x128xf32, #tpu.memory_space<vmem>>, vector<4x128xf32>
    %10 = vector.extract_strided_slice %0 {offsets = [0, 0], sizes = [8, 1], strides = [1, 1]} : vector<8x4xf32> to vector<8x1xf32>
    %11 = vector.extract_strided_slice %9 {offsets = [0, 0], sizes = [1, 128], strides = [1, 1]} : vector<4x128xf32> to vector<1x128xf32>
    %12 = vector.broadcast %10 : vector<8x1xf32> to vector<8x128xf32>
    %13 = vector.broadcast %11 : vector<1x128xf32> to vector<8x128xf32>
    %14 = arith.mulf %12, %13 : vector<8x128xf32>
    %15 = arith.addf %8, %14 : vector<8x128xf32>
    %16 = vector.extract_strided_slice %0 {offsets = [0, 1], sizes = [8, 1], strides = [1, 1]} : vector<8x4xf32> to vector<8x1xf32>
    %17 = vector.extract_strided_slice %9 {offsets = [1, 0], sizes = [1, 128], strides = [1, 1]} : vector<4x128xf32> to vector<1x128xf32>
    %18 = vector.broadcast %16 : vector<8x1xf32> to vector<8x128xf32>
    %19 = vector.broadcast %17 : vector<1x128xf32> to vector<8x128xf32>
    %20 = arith.mulf %18, %19 : vector<8x128xf32>
    %21 = arith.addf %15, %20 : vector<8x128xf32>
    %22 = vector.extract_strided_slice %0 {offsets = [0, 2], sizes = [8, 1], strides = [1, 1]} : vector<8x4xf32> to vector<8x1xf32>
    %23 = vector.extract_strided_slice %9 {offsets = [2, 0], sizes = [1, 128], strides = [1, 1]} : vector<4x128xf32> to vector<1x128xf32>
    %24 = vector.broadcast %22 : vector<8x1xf32> to vector<8x128xf32>
    %25 = vector.broadcast %23 : vector<1x128xf32> to vector<8x128xf32>
    %26 = arith.mulf %24, %25 : vector<8x128xf32>
    %27 = arith.addf %21, %26 : vector<8x128xf32>
    %28 = vector.extract_strided_slice %0 {offsets = [0, 3], sizes = [8, 1], strides = [1, 1]} : vector<8x4xf32> to vector<8x1xf32>
    %29 = vector.extract_strided_slice %9 {offsets = [3, 0], sizes = [1, 128], strides = [1, 1]} : vector<4x128xf32> to vector<1x128xf32>
    %30 = vector.broadcast %28 : vector<8x1xf32> to vector<8x128xf32>
    %31 = vector.broadcast %29 : vector<1x128xf32> to vector<8x128xf32>
    %32 = arith.mulf %30, %31 : vector<8x128xf32>
    %33 = arith.addf %27, %32 : vector<8x128xf32>
    %34 = arith.truncf %33 : vector<8x128xf32> to vector<8x128xbf16>
    %cst = arith.constant 5.000000e-01 : bf16
    %35 = vector.broadcast %cst : bf16 to vector<8x128xbf16>
    %36 = arith.mulf %35, %34 : vector<8x128xbf16>
    %cst_9 = arith.constant 5.000000e-01 : bf16
    %37 = vector.broadcast %cst_9 : bf16 to vector<8x128xbf16>
    %38 = arith.mulf %37, %34 : vector<8x128xbf16>
    %39 = math.tanh %38 : vector<8x128xbf16>
    %cst_10 = arith.constant 1.000000e+00 : bf16
    %40 = vector.broadcast %cst_10 : bf16 to vector<8x128xbf16>
    %41 = arith.addf %40, %39 : vector<8x128xbf16>
    %42 = arith.mulf %36, %41 : vector<8x128xbf16>
    %c0_11 = arith.constant 0 : index
    %c0_12 = arith.constant 0 : index
    %43 = vector.load %arg6[%c0_11, %c0_12] : memref<128x128xbf16, #tpu.memory_space<vmem>>, vector<128x128xbf16>
    %cst_13 = arith.constant dense<0.000000e+00> : vector<8x128xf32>
    %44 = tpu.matmul %42, %43, %cst_13 {dimension_numbers = #tpu.dot_dimension_numbers<[1], [0], [0], [1], [0, 0, 1, 1], [], []>} : vector<8x128xbf16>, vector<128x128xbf16>, vector<8x128xf32> -> vector<8x128xf32>
    %c0_14 = arith.constant 0 : index
    %c0_15 = arith.constant 0 : index
    %45 = vector.load %arg7[%c0_14, %c0_15] : memref<1x128xf32, #tpu.memory_space<vmem>>, vector<1x128xf32>
    %46 = vector.broadcast %45 : vector<1x128xf32> to vector<8x128xf32>
    %47 = arith.addf %44, %46 : vector<8x128xf32>
    %48 = arith.truncf %47 : vector<8x128xf32> to vector<8x128xbf16>
    %cst_16 = arith.constant 5.000000e-01 : bf16
    %49 = vector.broadcast %cst_16 : bf16 to vector<8x128xbf16>
    %50 = arith.mulf %49, %48 : vector<8x128xbf16>
    %cst_17 = arith.constant 5.000000e-01 : bf16
    %51 = vector.broadcast %cst_17 : bf16 to vector<8x128xbf16>
    %52 = arith.mulf %51, %48 : vector<8x128xbf16>
    %53 = math.tanh %52 : vector<8x128xbf16>
    %cst_18 = arith.constant 1.000000e+00 : bf16
    %54 = vector.broadcast %cst_18 : bf16 to vector<8x128xbf16>
    %55 = arith.addf %54, %53 : vector<8x128xbf16>
    %56 = arith.mulf %50, %55 : vector<8x128xbf16>
    %c0_19 = arith.constant 0 : index
    %c0_20 = arith.constant 0 : index
    %57 = vector.load %arg8[%c0_19, %c0_20] : memref<128x128xbf16, #tpu.memory_space<vmem>>, vector<128x128xbf16>
    %cst_21 = arith.constant dense<0.000000e+00> : vector<8x128xf32>
    %58 = tpu.matmul %56, %57, %cst_21 {dimension_numbers = #tpu.dot_dimension_numbers<[1], [0], [0], [1], [0, 0, 1, 1], [], []>} : vector<8x128xbf16>, vector<128x128xbf16>, vector<8x128xf32> -> vector<8x128xf32>
    %c0_22 = arith.constant 0 : index
    %c0_23 = arith.constant 0 : index
    %59 = vector.load %arg9[%c0_22, %c0_23] : memref<1x128xf32, #tpu.memory_space<vmem>>, vector<1x128xf32>
    %60 = vector.broadcast %59 : vector<1x128xf32> to vector<8x128xf32>
    %61 = arith.addf %58, %60 : vector<8x128xf32>
    %62 = arith.truncf %61 : vector<8x128xf32> to vector<8x128xbf16>
    %cst_24 = arith.constant 5.000000e-01 : bf16
    %63 = vector.broadcast %cst_24 : bf16 to vector<8x128xbf16>
    %64 = arith.mulf %63, %62 : vector<8x128xbf16>
    %cst_25 = arith.constant 5.000000e-01 : bf16
    %65 = vector.broadcast %cst_25 : bf16 to vector<8x128xbf16>
    %66 = arith.mulf %65, %62 : vector<8x128xbf16>
    %67 = math.tanh %66 : vector<8x128xbf16>
    %cst_26 = arith.constant 1.000000e+00 : bf16
    %68 = vector.broadcast %cst_26 : bf16 to vector<8x128xbf16>
    %69 = arith.addf %68, %67 : vector<8x128xbf16>
    %70 = arith.mulf %64, %69 : vector<8x128xbf16>
    %c0_27 = arith.constant 0 : index
    %c0_28 = arith.constant 0 : index
    %71 = vector.load %arg10[%c0_27, %c0_28] : memref<128x128xbf16, #tpu.memory_space<vmem>>, vector<128x128xbf16>
    %cst_29 = arith.constant dense<0.000000e+00> : vector<8x128xf32>
    %72 = tpu.matmul %70, %71, %cst_29 {dimension_numbers = #tpu.dot_dimension_numbers<[1], [0], [0], [1], [0, 0, 1, 1], [], []>} : vector<8x128xbf16>, vector<128x128xbf16>, vector<8x128xf32> -> vector<8x128xf32>
    %c0_30 = arith.constant 0 : index
    %c0_31 = arith.constant 0 : index
    %73 = vector.load %arg11[%c0_30, %c0_31] : memref<1x128xf32, #tpu.memory_space<vmem>>, vector<1x128xf32>
    %74 = vector.broadcast %73 : vector<1x128xf32> to vector<8x128xf32>
    %75 = arith.addf %72, %74 : vector<8x128xf32>
    %76 = arith.truncf %75 : vector<8x128xf32> to vector<8x128xbf16>
    %cst_32 = arith.constant 5.000000e-01 : bf16
    %77 = vector.broadcast %cst_32 : bf16 to vector<8x128xbf16>
    %78 = arith.mulf %77, %76 : vector<8x128xbf16>
    %cst_33 = arith.constant 5.000000e-01 : bf16
    %79 = vector.broadcast %cst_33 : bf16 to vector<8x128xbf16>
    %80 = arith.mulf %79, %76 : vector<8x128xbf16>
    %81 = math.tanh %80 : vector<8x128xbf16>
    %cst_34 = arith.constant 1.000000e+00 : bf16
    %82 = vector.broadcast %cst_34 : bf16 to vector<8x128xbf16>
    %83 = arith.addf %82, %81 : vector<8x128xbf16>
    %84 = arith.mulf %78, %83 : vector<8x128xbf16>
    %c0_35 = arith.constant 0 : index
    %c0_36 = arith.constant 0 : index
    %85 = vector.load %arg12[%c0_35, %c0_36] : memref<128x128xbf16, #tpu.memory_space<vmem>>, vector<128x128xbf16>
    %cst_37 = arith.constant dense<0.000000e+00> : vector<8x128xf32>
    %86 = tpu.matmul %84, %85, %cst_37 {dimension_numbers = #tpu.dot_dimension_numbers<[1], [0], [0], [1], [0, 0, 1, 1], [], []>} : vector<8x128xbf16>, vector<128x128xbf16>, vector<8x128xf32> -> vector<8x128xf32>
    %c0_38 = arith.constant 0 : index
    %c0_39 = arith.constant 0 : index
    %87 = vector.load %arg13[%c0_38, %c0_39] : memref<1x128xf32, #tpu.memory_space<vmem>>, vector<1x128xf32>
    %88 = vector.broadcast %87 : vector<1x128xf32> to vector<8x128xf32>
    %89 = arith.addf %86, %88 : vector<8x128xf32>
    %c0_40 = arith.constant 0 : index
    %c0_41 = arith.constant 0 : index
    %90 = vector.load %arg14[%c0_40, %c0_41] : memref<8x128xf32, #tpu.memory_space<vmem>>, vector<8x128xf32>
    tpu.vector_store %arg14[%c0_40, %c0_41], %89 {strides = array<i32>} : memref<8x128xf32, #tpu.memory_space<vmem>>, vector<8x128xf32>,
    return
  }
  func.func @transform_0(%arg0: i32) -> (i32, i32) {
    %c0_i32 = arith.constant 0 : i32
    %c0_i32_0 = arith.constant 0 : i32
    return %arg0, %c0_i32 : i32, i32
  }
  func.func @transform_1(%arg0: i32) -> (i32, i32) {
    %c0_i32 = arith.constant 0 : i32
    %c0_i32_0 = arith.constant 0 : i32
    return %arg0, %c0_i32 : i32, i32
  }
  func.func @transform_2(%arg0: i32) -> (i32, i32) {
    %c0_i32 = arith.constant 0 : i32
    %c0_i32_0 = arith.constant 0 : i32
    %c0_i32_1 = arith.constant 0 : i32
    return %c0_i32, %c0_i32_0 : i32, i32
  }
  func.func @transform_3(%arg0: i32) -> (i32, i32) {
    %c0_i32 = arith.constant 0 : i32
    %c0_i32_0 = arith.constant 0 : i32
    %c0_i32_1 = arith.constant 0 : i32
    return %c0_i32, %c0_i32_0 : i32, i32
  }
  func.func @transform_4(%arg0: i32) -> (i32, i32) {
    %c0_i32 = arith.constant 0 : i32
    %c0_i32_0 = arith.constant 0 : i32
    %c0_i32_1 = arith.constant 0 : i32
    return %c0_i32, %c0_i32_0 : i32, i32
  }
  func.func @transform_5(%arg0: i32) -> (i32, i32) {
    %c0_i32 = arith.constant 0 : i32
    %c0_i32_0 = arith.constant 0 : i32
    %c0_i32_1 = arith.constant 0 : i32
    return %c0_i32, %c0_i32_0 : i32, i32
  }
  func.func @transform_6(%arg0: i32) -> (i32, i32) {
    %c0_i32 = arith.constant 0 : i32
    %c0_i32_0 = arith.constant 0 : i32
    %c0_i32_1 = arith.constant 0 : i32
    return %c0_i32, %c0_i32_0 : i32, i32
  }
  func.func @transform_7(%arg0: i32) -> (i32, i32) {
    %c0_i32 = arith.constant 0 : i32
    %c0_i32_0 = arith.constant 0 : i32
    %c0_i32_1 = arith.constant 0 : i32
    return %c0_i32, %c0_i32_0 : i32, i32
  }
  func.func @transform_8(%arg0: i32) -> (i32, i32) {
    %c0_i32 = arith.constant 0 : i32
    %c0_i32_0 = arith.constant 0 : i32
    %c0_i32_1 = arith.constant 0 : i32
    return %c0_i32, %c0_i32_0 : i32, i32
  }
  func.func @transform_9(%arg0: i32) -> (i32, i32) {
    %c0_i32 = arith.constant 0 : i32
    %c0_i32_0 = arith.constant 0 : i32
    %c0_i32_1 = arith.constant 0 : i32
    return %c0_i32, %c0_i32_0 : i32, i32
  }
  func.func @transform_10(%arg0: i32) -> (i32, i32) {
    %c0_i32 = arith.constant 0 : i32
    %c0_i32_0 = arith.constant 0 : i32
    %c0_i32_1 = arith.constant 0 : i32
    return %c0_i32, %c0_i32_0 : i32, i32
  }
  func.func @transform_11(%arg0: i32) -> (i32, i32) {
    %c0_i32 = arith.constant 0 : i32
    %c0_i32_0 = arith.constant 0 : i32
    %c0_i32_1 = arith.constant 0 : i32
    return %c0_i32, %c0_i32_0 : i32, i32
  }
  func.func @transform_12(%arg0: i32) -> (i32, i32) {
    %c0_i32 = arith.constant 0 : i32
    %c0_i32_0 = arith.constant 0 : i32
    %c0_i32_1 = arith.constant 0 : i32
    return %c0_i32, %c0_i32_0 : i32, i32
  }
  func.func @transform_13(%arg0: i32) -> (i32, i32) {
    %c0_i32 = arith.constant 0 : i32
    %c0_i32_0 = arith.constant 0 : i32
    return %arg0, %c0_i32 : i32, i32
  }
}

</mosaic_0001>

<llo_original>
// kernel: mlp_forward.1
$region0: #{mlp_forward.1}
  #allocation0 [shape = 'u32[]', space=smem, size = 0x4, offset = 0x4, fixed_abs, tag = 'smem constant byte address 0x4 - core index']
  #allocation1 [shape = 'u32[144,128]{1,0:T(1,128)}', space=vmem, size = 0x12000, scoped, tag = 'internal scratch']
  %s0 = inlined_call_operand.vmem [shape: f32[8,4], index: 0, kind: input, shape index: {}]
  %s1 = inlined_call_operand.vmem [shape: f32[8,1], index: 1, kind: input, shape index: {}]
  %s2 = inlined_call_operand.vmem [shape: f32[4,128], index: 2, kind: input, shape index: {}]
  %s3 = inlined_call_operand.vmem [shape: f32[1,128], index: 3, kind: input, shape index: {}]
  %s4 = inlined_call_operand.vmem [shape: f32[1,128], index: 4, kind: input, shape index: {}]
  %s5 = inlined_call_operand.vmem [shape: bf16[128,128], index: 5, kind: input, shape index: {}]
  %s6 = inlined_call_operand.vmem [shape: f32[1,128], index: 6, kind: input, shape index: {}]
  %s7 = inlined_call_operand.vmem [shape: bf16[128,128], index: 7, kind: input, shape index: {}]
  %s8 = inlined_call_operand.vmem [shape: f32[1,128], index: 8, kind: input, shape index: {}]
  %s9 = inlined_call_operand.vmem [shape: bf16[128,128], index: 9, kind: input, shape index: {}]
  %s10 = inlined_call_operand.vmem [shape: f32[1,128], index: 10, kind: input, shape index: {}]
  %s11 = inlined_call_operand.vmem [shape: bf16[128,128], index: 11, kind: input, shape index: {}]
  %s12 = inlined_call_operand.vmem [shape: f32[1,128], index: 12, kind: input, shape index: {}]
  %s13 = inlined_call_operand.vmem [shape: f32[8,128], index: 13, kind: output, shape index: {}]
  %s14 = sld [smem:[#allocation0]]
  $region62: #{mlp_forward.1} parent=0
    _
  %s16 = ssub.s32 1, %s14
  %s17 = scalar_select 0, %s16, %s14
  // Predicated region
  $region2: #{mlp_forward.1} parent=0 // pred_check
    _
  $region3: #{mlp_forward.1} parent=0 // pred_check_branch
    %19 = sbr.rel (0) target = $region5
  $region4: #{mlp_forward.1} parent=0 // pred_region
    _
  $region5: #{mlp_forward.1} parent=0 // pred_fallthru
    _
  // Predicated region
  $region6: #{mlp_forward.1} parent=0 // pred_check
    _
  $region7: #{mlp_forward.1} parent=0 // pred_check_branch
    %21 = sbr.rel (0) target = $region9
  $region8: #{mlp_forward.1} parent=0 // pred_region
    _
  $region9: #{mlp_forward.1} parent=0 // pred_fallthru
    _
  // Predicated region
  $region10: #{mlp_forward.1} parent=0 // pred_check
    _
  $region11: #{mlp_forward.1} parent=0 // pred_check_branch
    %23 = sbr.rel (0) target = $region13
  $region12: #{mlp_forward.1} parent=0 // pred_region
    _
  $region13: #{mlp_forward.1} parent=0 // pred_fallthru
    _
  // Predicated region
  $region14: #{mlp_forward.1} parent=0 // pred_check
    _
  $region15: #{mlp_forward.1} parent=0 // pred_check_branch
    %25 = sbr.rel (0) target = $region17
  $region16: #{mlp_forward.1} parent=0 // pred_region
    _
  $region17: #{mlp_forward.1} parent=0 // pred_fallthru
    _
  // Predicated region
  $region18: #{mlp_forward.1} parent=0 // pred_check
    _
  $region19: #{mlp_forward.1} parent=0 // pred_check_branch
    %27 = sbr.rel (0) target = $region21
  $region20: #{mlp_forward.1} parent=0 // pred_region
    _
  $region21: #{mlp_forward.1} parent=0 // pred_fallthru
    _
  // Predicated region
  $region22: #{mlp_forward.1} parent=0 // pred_check
    _
  $region23: #{mlp_forward.1} parent=0 // pred_check_branch
    %29 = sbr.rel (0) target = $region25
  $region24: #{mlp_forward.1} parent=0 // pred_region
    _
  $region25: #{mlp_forward.1} parent=0 // pred_fallthru
    _
  // Predicated region
  $region26: #{mlp_forward.1} parent=0 // pred_check
    _
  $region27: #{mlp_forward.1} parent=0 // pred_check_branch
    %31 = sbr.rel (0) target = $region29
  $region28: #{mlp_forward.1} parent=0 // pred_region
    _
  $region29: #{mlp_forward.1} parent=0 // pred_fallthru
    _
  // Predicated region
  $region30: #{mlp_forward.1} parent=0 // pred_check
    _
  $region31: #{mlp_forward.1} parent=0 // pred_check_branch
    %33 = sbr.rel (0) target = $region33
  $region32: #{mlp_forward.1} parent=0 // pred_region
    _
  $region33: #{mlp_forward.1} parent=0 // pred_fallthru
    _
  // Predicated region
  $region34: #{mlp_forward.1} parent=0 // pred_check
    _
  $region35: #{mlp_forward.1} parent=0 // pred_check_branch
    %35 = sbr.rel (0) target = $region37
  $region36: #{mlp_forward.1} parent=0 // pred_region
    _
  $region37: #{mlp_forward.1} parent=0 // pred_fallthru
    _
  // Predicated region
  $region38: #{mlp_forward.1} parent=0 // pred_check
    _
  $region39: #{mlp_forward.1} parent=0 // pred_check_branch
    %37 = sbr.rel (0) target = $region41
  $region40: #{mlp_forward.1} parent=0 // pred_region
    _
  $region41: #{mlp_forward.1} parent=0 // pred_fallthru
    _
  // Predicated region
  $region42: #{mlp_forward.1} parent=0 // pred_check
    _
  $region43: #{mlp_forward.1} parent=0 // pred_check_branch
    %39 = sbr.rel (0) target = $region45
  $region44: #{mlp_forward.1} parent=0 // pred_region
    _
  $region45: #{mlp_forward.1} parent=0 // pred_fallthru
    _
  // Predicated region
  $region46: #{mlp_forward.1} parent=0 // pred_check
    _
  $region47: #{mlp_forward.1} parent=0 // pred_check_branch
    %41 = sbr.rel (0) target = $region49
  $region48: #{mlp_forward.1} parent=0 // pred_region
    _
  $region49: #{mlp_forward.1} parent=0 // pred_fallthru
    _
  // Predicated region
  $region50: #{mlp_forward.1} parent=0 // pred_check
    _
  $region51: #{mlp_forward.1} parent=0 // pred_check_branch
    %43 = sbr.rel (0) target = $region53
  $region52: #{mlp_forward.1} parent=0 // pred_region
    _
  $region53: #{mlp_forward.1} parent=0 // pred_fallthru
    _
  %v47 = vld [vmem:[%s0] sm:$0xff]
  %v48 = vld [vmem:[%s1] sm:$0xff]
  %v49 = vld [vmem:[%s3] sm:$0x1]
  %51 = vset.pattern.permute.xlu0 0
  %52 = vperm.xlu0 %51, %v48
  %v53 = vpop.permute.xlu0 %52
  %v56 = vlaneseq
  %v57 = vshrl.u32 %v56, 7
  %v58 = vsub.s32 0, %v57
  %v59 = vrot.slane %v49, %v58
  %v61 = vmul.f32 %v53, %v59
  %v62 = vld [vmem:[%s4] sm:$0x1]
  %v64 = vlaneseq
  %v65 = vshrl.u32 %v64, 7
  %v66 = vsub.s32 0, %v65
  %v67 = vrot.slane %v62, %v66
  %v69 = vadd.f32 %v61, %v67
  %v70 = vld [vmem:[%s2] sm:$0xf]
  %72 = vset.pattern.permute.xlu0 0
  %73 = vperm.xlu0 %72, %v47
  %v74 = vpop.permute.xlu0 %73
  %v76 = vlaneseq
  %v77 = vshrl.u32 %v76, 7
  %v78 = vsub.s32 0, %v77
  %v79 = vrot.slane %v70, %v78
  %v80 = vmul.f32 %v74, %v79
  %v81 = vadd.f32 %v69, %v80
  %82 = vset.pattern.permute.xlu0 1
  %83 = vperm.xlu0 %82, %v47
  %v84 = vpop.permute.xlu0 %83
  %v86 = vlaneseq
  %v87 = vshrl.u32 %v86, 7
  %v88 = vsub.s32 1, %v87
  %v89 = vrot.slane %v70, %v88
  %v90 = vmul.f32 %v84, %v89
  %v91 = vadd.f32 %v81, %v90
  %92 = vset.pattern.permute.xlu0 2
  %93 = vperm.xlu0 %92, %v47
  %v94 = vpop.permute.xlu0 %93
  %v96 = vlaneseq
  %v97 = vshrl.u32 %v96, 7
  %v98 = vsub.s32 2, %v97
  %v99 = vrot.slane %v70, %v98
  %v100 = vmul.f32 %v94, %v99
  %v101 = vadd.f32 %v91, %v100
  %102 = vset.pattern.permute.xlu0 3
  %103 = vperm.xlu0 %102, %v47
  %v104 = vpop.permute.xlu0 %103
  %v106 = vlaneseq
  %v107 = vshrl.u32 %v106, 7
  %v108 = vsub.s32 3, %v107
  %v109 = vrot.slane %v70, %v108
  %v110 = vmul.f32 %v104, %v109
  %v111 = vadd.f32 %v101, %v110
  %v112 = vpack.c.bf16 %v111, %v111
  %v113 = vmul.bf16 %v112, 1056980736
  %v114 = vtanh.bf16.pop %v113
  %v115 = vadd.bf16 %v114, 1065369472
  %v116 = vmul.bf16 %v113, %v115
  %v117 = vld [vmem:[%s5] sm:$0xf]
  %v118 = vld [vmem:[%s5 + $0x4] sm:$0xf]
  %v119 = vld [vmem:[%s5 + $0x8] sm:$0xf]
  %v120 = vld [vmem:[%s5 + $0xc] sm:$0xf]
  %v121 = vld [vmem:[%s5 + $0x10] sm:$0xf]
  %v122 = vld [vmem:[%s5 + $0x14] sm:$0xf]
  %v123 = vld [vmem:[%s5 + $0x18] sm:$0xf]
  %v124 = vld [vmem:[%s5 + $0x1c] sm:$0xf]
  %v125 = vld [vmem:[%s5 + $0x20] sm:$0xf]
  %v126 = vld [vmem:[%s5 + $0x24] sm:$0xf]
  %v127 = vld [vmem:[%s5 + $0x28] sm:$0xf]
  %v128 = vld [vmem:[%s5 + $0x2c] sm:$0xf]
  %v129 = vld [vmem:[%s5 + $0x30] sm:$0xf]
  %v130 = vld [vmem:[%s5 + $0x34] sm:$0xf]
  %v131 = vld [vmem:[%s5 + $0x38] sm:$0xf]
  %v132 = vld [vmem:[%s5 + $0x3c] sm:$0xf]
  %v133 = vld [vmem:[%s6] sm:$0x1]
  %v135 = vlaneseq
  %v136 = vshrl.u32 %v135, 7
  %v137 = vsub.s32 0, %v136
  %v138 = vrot.slane %v133, %v137
  %v156 = vunpack.c.l.b16 %v117
  %v157 = vunpack.c.l.b16 %v118
  %v158 = vunpack.c.l.b16 %v119
  %v159 = vunpack.c.l.b16 %v120
  %v160 = vunpack.c.l.b16 %v121
  %v161 = vunpack.c.l.b16 %v122
  %v162 = vunpack.c.l.b16 %v123
  %v163 = vunpack.c.l.b16 %v124
  %v164 = vunpack.c.l.b16 %v125
  %v165 = vunpack.c.l.b16 %v126
  %v166 = vunpack.c.l.b16 %v127
  %v167 = vunpack.c.l.b16 %v128
  %v168 = vunpack.c.l.b16 %v129
  %v169 = vunpack.c.l.b16 %v130
  %v170 = vunpack.c.l.b16 %v131
  %v171 = vunpack.c.l.b16 %v132
  %v172 = vpack.c.b16 %v157, %v156
  %v173 = vpack.c.b16 %v159, %v158
  %v174 = vpack.c.b16 %v161, %v160
  %v175 = vpack.c.b16 %v163, %v162
  %v176 = vpack.c.b16 %v165, %v164
  %v177 = vpack.c.b16 %v167, %v166
  %v178 = vpack.c.b16 %v169, %v168
  %v179 = vpack.c.b16 %v171, %v170
  %188 = vmatprep.subr.bf16.mxu0 0
  %189 = vmatpush1.bf16.msra.mxu0 %v172
  %190 = vmatprep.subr.bf16.mxu0 0
  %191 = vmatpush1.bf16.msra.mxu0 %v173
  %192 = vmatprep.subr.bf16.mxu0 0
  %193 = vmatpush1.bf16.msra.mxu0 %v174
  %194 = vmatprep.subr.bf16.mxu0 0
  %195 = vmatpush1.bf16.msra.mxu0 %v175
  %196 = vmatprep.subr.bf16.mxu0 0
  %197 = vmatpush1.bf16.msra.mxu0 %v176
  %198 = vmatprep.subr.bf16.mxu0 0
  %199 = vmatpush1.bf16.msra.mxu0 %v177
  %200 = vmatprep.subr.bf16.mxu0 0
  %201 = vmatpush1.bf16.msra.mxu0 %v178
  %202 = vmatprep.subr.bf16.mxu0 0
  %203 = vmatpush1.bf16.msra.mxu0 %v179
  %204 = vmatprep.subr.bf16.mxu0 0
  %205 = vmatpush1.bf16.msra.mxu0 0
  %206 = vmatprep.subr.bf16.mxu0 0
  %207 = vmatpush1.bf16.msra.mxu0 0
  %208 = vmatprep.subr.bf16.mxu0 0
  %209 = vmatpush1.bf16.msra.mxu0 0
  %210 = vmatprep.subr.bf16.mxu0 0
  %211 = vmatpush1.bf16.msra.mxu0 0
  %212 = vmatprep.subr.bf16.mxu0 0
  %213 = vmatpush1.bf16.msra.mxu0 0
  %214 = vmatprep.subr.bf16.mxu0 0
  %215 = vmatpush1.bf16.msra.mxu0 0
  %216 = vmatprep.subr.bf16.mxu0 0
  %217 = vmatpush1.bf16.msra.mxu0 0
  %218 = vmatprep.subr.bf16.mxu0 0
  %219 = vmatpush1.bf16.msra.mxu0 0
  %220 = vmatprep.mubr.bf16.mxu0 0
  %221 = vmatmul.mubr.bf16.gmra.mrb[0].mxu0 %v116
  %v222 = vpop.f32.mrb[0].mxu0
  %v223 = vadd.f32 %v138, %v222
  %v224 = vpop.f32.mrb[0].mxu0
  %v225 = vpop.f32.mrb[0].mxu0
  %v226 = vpop.f32.mrb[0].mxu0
  %227 = vdwg.mxu0
  %v228 = vpack.c.bf16 %v223, %v223
  %v229 = vmul.bf16 %v228, 1056980736
  %v230 = vtanh.bf16.pop %v229
  %v231 = vadd.bf16 %v230, 1065369472
  %v232 = vmul.bf16 %v229, %v231
  %v233 = vld [vmem:[%s7] sm:$0xf]
  %v234 = vld [vmem:[%s7 + $0x4] sm:$0xf]
  %v235 = vld [vmem:[%s7 + $0x8] sm:$0xf]
  %v236 = vld [vmem:[%s7 + $0xc] sm:$0xf]
  %v237 = vld [vmem:[%s7 + $0x10] sm:$0xf]
  %v238 = vld [vmem:[%s7 + $0x14] sm:$0xf]
  %v239 = vld [vmem:[%s7 + $0x18] sm:$0xf]
  %v240 = vld [vmem:[%s7 + $0x1c] sm:$0xf]
  %v241 = vld [vmem:[%s7 + $0x20] sm:$0xf]
  %v242 = vld [vmem:[%s7 + $0x24] sm:$0xf]
  %v243 = vld [vmem:[%s7 + $0x28] sm:$0xf]
  %v244 = vld [vmem:[%s7 + $0x2c] sm:$0xf]
  %v245 = vld [vmem:[%s7 + $0x30] sm:$0xf]
  %v246 = vld [vmem:[%s7 + $0x34] sm:$0xf]
  %v247 = vld [vmem:[%s7 + $0x38] sm:$0xf]
  %v248 = vld [vmem:[%s7 + $0x3c] sm:$0xf]
  %v249 = vld [vmem:[%s8] sm:$0x1]
  %v251 = vlaneseq
  %v252 = vshrl.u32 %v251, 7
  %v253 = vsub.s32 0, %v252
  %v254 = vrot.slane %v249, %v253
  %v272 = vunpack.c.l.b16 %v233
  %v273 = vunpack.c.l.b16 %v234
  %v274 = vunpack.c.l.b16 %v235
  %v275 = vunpack.c.l.b16 %v236
  %v276 = vunpack.c.l.b16 %v237
  %v277 = vunpack.c.l.b16 %v238
  %v278 = vunpack.c.l.b16 %v239
  %v279 = vunpack.c.l.b16 %v240
  %v280 = vunpack.c.l.b16 %v241
  %v281 = vunpack.c.l.b16 %v242
  %v282 = vunpack.c.l.b16 %v243
  %v283 = vunpack.c.l.b16 %v244
  %v284 = vunpack.c.l.b16 %v245
  %v285 = vunpack.c.l.b16 %v246
  %v286 = vunpack.c.l.b16 %v247
  %v287 = vunpack.c.l.b16 %v248
  %v288 = vpack.c.b16 %v273, %v272
  %v289 = vpack.c.b16 %v275, %v274
  %v290 = vpack.c.b16 %v277, %v276
  %v291 = vpack.c.b16 %v279, %v278
  %v292 = vpack.c.b16 %v281, %v280
  %v293 = vpack.c.b16 %v283, %v282
  %v294 = vpack.c.b16 %v285, %v284
  %v295 = vpack.c.b16 %v287, %v286
  %304 = vmatprep.subr.bf16.mxu0 0
  %305 = vmatpush1.bf16.msra.mxu0 %v288
  %306 = vmatprep.subr.bf16.mxu0 0
  %307 = vmatpush1.bf16.msra.mxu0 %v289
  %308 = vmatprep.subr.bf16.mxu0 0
  %309 = vmatpush1.bf16.msra.mxu0 %v290
  %310 = vmatprep.subr.bf16.mxu0 0
  %311 = vmatpush1.bf16.msra.mxu0 %v291
  %312 = vmatprep.subr.bf16.mxu0 0
  %313 = vmatpush1.bf16.msra.mxu0 %v292
  %314 = vmatprep.subr.bf16.mxu0 0
  %315 = vmatpush1.bf16.msra.mxu0 %v293
  %316 = vmatprep.subr.bf16.mxu0 0
  %317 = vmatpush1.bf16.msra.mxu0 %v294
  %318 = vmatprep.subr.bf16.mxu0 0
  %319 = vmatpush1.bf16.msra.mxu0 %v295
  %320 = vmatprep.subr.bf16.mxu0 0
  %321 = vmatpush1.bf16.msra.mxu0 0
  %322 = vmatprep.subr.bf16.mxu0 0
  %323 = vmatpush1.bf16.msra.mxu0 0
  %324 = vmatprep.subr.bf16.mxu0 0
  %325 = vmatpush1.bf16.msra.mxu0 0
  %326 = vmatprep.subr.bf16.mxu0 0
  %327 = vmatpush1.bf16.msra.mxu0 0
  %328 = vmatprep.subr.bf16.mxu0 0
  %329 = vmatpush1.bf16.msra.mxu0 0
  %330 = vmatprep.subr.bf16.mxu0 0
  %331 = vmatpush1.bf16.msra.mxu0 0
  %332 = vmatprep.subr.bf16.mxu0 0
  %333 = vmatpush1.bf16.msra.mxu0 0
  %334 = vmatprep.subr.bf16.mxu0 0
  %335 = vmatpush1.bf16.msra.mxu0 0
  %336 = vmatprep.mubr.bf16.mxu0 0
  %337 = vmatmul.mubr.bf16.gmra.mrb[0].mxu0 %v232
  %v338 = vpop.f32.mrb[0].mxu0
  %v339 = vadd.f32 %v254, %v338
  %v340 = vpop.f32.mrb[0].mxu0
  %v341 = vpop.f32.mrb[0].mxu0
  %v342 = vpop.f32.mrb[0].mxu0
  %343 = vdwg.mxu0
  %v344 = vpack.c.bf16 %v339, %v339
  %v345 = vmul.bf16 %v344, 1056980736
  %v346 = vtanh.bf16.pop %v345
  %v347 = vadd.bf16 %v346, 1065369472
  %v348 = vmul.bf16 %v345, %v347
  %v349 = vld [vmem:[%s9] sm:$0xf]
  %v350 = vld [vmem:[%s9 + $0x4] sm:$0xf]
  %v351 = vld [vmem:[%s9 + $0x8] sm:$0xf]
  %v352 = vld [vmem:[%s9 + $0xc] sm:$0xf]
  %v353 = vld [vmem:[%s9 + $0x10] sm:$0xf]
  %v354 = vld [vmem:[%s9 + $0x14] sm:$0xf]
  %v355 = vld [vmem:[%s9 + $0x18] sm:$0xf]
  %v356 = vld [vmem:[%s9 + $0x1c] sm:$0xf]
  %v357 = vld [vmem:[%s9 + $0x20] sm:$0xf]
  %v358 = vld [vmem:[%s9 + $0x24] sm:$0xf]
  %v359 = vld [vmem:[%s9 + $0x28] sm:$0xf]
  %v360 = vld [vmem:[%s9 + $0x2c] sm:$0xf]
  %v361 = vld [vmem:[%s9 + $0x30] sm:$0xf]
  %v362 = vld [vmem:[%s9 + $0x34] sm:$0xf]
  %v363 = vld [vmem:[%s9 + $0x38] sm:$0xf]
  %v364 = vld [vmem:[%s9 + $0x3c] sm:$0xf]
  %v365 = vld [vmem:[%s10] sm:$0x1]
  %v367 = vlaneseq
  %v368 = vshrl.u32 %v367, 7
  %v369 = vsub.s32 0, %v368
  %v370 = vrot.slane %v365, %v369
  %v388 = vunpack.c.l.b16 %v349
  %v389 = vunpack.c.l.b16 %v350
  %v390 = vunpack.c.l.b16 %v351
  %v391 = vunpack.c.l.b16 %v352
  %v392 = vunpack.c.l.b16 %v353
  %v393 = vunpack.c.l.b16 %v354
  %v394 = vunpack.c.l.b16 %v355
  %v395 = vunpack.c.l.b16 %v356
  %v396 = vunpack.c.l.b16 %v357
  %v397 = vunpack.c.l.b16 %v358
  %v398 = vunpack.c.l.b16 %v359
  %v399 = vunpack.c.l.b16 %v360
  %v400 = vunpack.c.l.b16 %v361
  %v401 = vunpack.c.l.b16 %v362
  %v402 = vunpack.c.l.b16 %v363
  %v403 = vunpack.c.l.b16 %v364
  %v404 = vpack.c.b16 %v389, %v388
  %v405 = vpack.c.b16 %v391, %v390
  %v406 = vpack.c.b16 %v393, %v392
  %v407 = vpack.c.b16 %v395, %v394
  %v408 = vpack.c.b16 %v397, %v396
  %v409 = vpack.c.b16 %v399, %v398
  %v410 = vpack.c.b16 %v401, %v400
  %v411 = vpack.c.b16 %v403, %v402
  %420 = vmatprep.subr.bf16.mxu0 0
  %421 = vmatpush1.bf16.msra.mxu0 %v404
  %422 = vmatprep.subr.bf16.mxu0 0
  %423 = vmatpush1.bf16.msra.mxu0 %v405
  %424 = vmatprep.subr.bf16.mxu0 0
  %425 = vmatpush1.bf16.msra.mxu0 %v406
  %426 = vmatprep.subr.bf16.mxu0 0
  %427 = vmatpush1.bf16.msra.mxu0 %v407
  %428 = vmatprep.subr.bf16.mxu0 0
  %429 = vmatpush1.bf16.msra.mxu0 %v408
  %430 = vmatprep.subr.bf16.mxu0 0
  %431 = vmatpush1.bf16.msra.mxu0 %v409
  %432 = vmatprep.subr.bf16.mxu0 0
  %433 = vmatpush1.bf16.msra.mxu0 %v410
  %434 = vmatprep.subr.bf16.mxu0 0
  %435 = vmatpush1.bf16.msra.mxu0 %v411
  %436 = vmatprep.subr.bf16.mxu0 0
  %437 = vmatpush1.bf16.msra.mxu0 0
  %438 = vmatprep.subr.bf16.mxu0 0
  %439 = vmatpush1.bf16.msra.mxu0 0
  %440 = vmatprep.subr.bf16.mxu0 0
  %441 = vmatpush1.bf16.msra.mxu0 0
  %442 = vmatprep.subr.bf16.mxu0 0
  %443 = vmatpush1.bf16.msra.mxu0 0
  %444 = vmatprep.subr.bf16.mxu0 0
  %445 = vmatpush1.bf16.msra.mxu0 0
  %446 = vmatprep.subr.bf16.mxu0 0
  %447 = vmatpush1.bf16.msra.mxu0 0
  %448 = vmatprep.subr.bf16.mxu0 0
  %449 = vmatpush1.bf16.msra.mxu0 0
  %450 = vmatprep.subr.bf16.mxu0 0
  %451 = vmatpush1.bf16.msra.mxu0 0
  %452 = vmatprep.mubr.bf16.mxu0 0
  %453 = vmatmul.mubr.bf16.gmra.mrb[0].mxu0 %v348
  %v454 = vpop.f32.mrb[0].mxu0
  %v455 = vadd.f32 %v370, %v454
  %v456 = vpop.f32.mrb[0].mxu0
  %v457 = vpop.f32.mrb[0].mxu0
  %v458 = vpop.f32.mrb[0].mxu0
  %459 = vdwg.mxu0
  %v460 = vpack.c.bf16 %v455, %v455
  %v461 = vmul.bf16 %v460, 1056980736
  %v462 = vtanh.bf16.pop %v461
  %v463 = vadd.bf16 %v462, 1065369472
  %v464 = vmul.bf16 %v461, %v463
  %v465 = vld [vmem:[%s11] sm:$0xf]
  %v466 = vld [vmem:[%s11 + $0x4] sm:$0xf]
  %v467 = vld [vmem:[%s11 + $0x8] sm:$0xf]
  %v468 = vld [vmem:[%s11 + $0xc] sm:$0xf]
  %v469 = vld [vmem:[%s11 + $0x10] sm:$0xf]
  %v470 = vld [vmem:[%s11 + $0x14] sm:$0xf]
  %v471 = vld [vmem:[%s11 + $0x18] sm:$0xf]
  %v472 = vld [vmem:[%s11 + $0x1c] sm:$0xf]
  %v473 = vld [vmem:[%s11 + $0x20] sm:$0xf]
  %v474 = vld [vmem:[%s11 + $0x24] sm:$0xf]
  %v475 = vld [vmem:[%s11 + $0x28] sm:$0xf]
  %v476 = vld [vmem:[%s11 + $0x2c] sm:$0xf]
  %v477 = vld [vmem:[%s11 + $0x30] sm:$0xf]
  %v478 = vld [vmem:[%s11 + $0x34] sm:$0xf]
  %v479 = vld [vmem:[%s11 + $0x38] sm:$0xf]
  %v480 = vld [vmem:[%s11 + $0x3c] sm:$0xf]
  %v481 = vld [vmem:[%s12] sm:$0x1]
  %v483 = vlaneseq
  %v484 = vshrl.u32 %v483, 7
  %v485 = vsub.s32 0, %v484
  %v486 = vrot.slane %v481, %v485
  %v504 = vunpack.c.l.b16 %v465
  %v505 = vunpack.c.l.b16 %v466
  %v506 = vunpack.c.l.b16 %v467
  %v507 = vunpack.c.l.b16 %v468
  %v508 = vunpack.c.l.b16 %v469
  %v509 = vunpack.c.l.b16 %v470
  %v510 = vunpack.c.l.b16 %v471
  %v511 = vunpack.c.l.b16 %v472
  %v512 = vunpack.c.l.b16 %v473
  %v513 = vunpack.c.l.b16 %v474
  %v514 = vunpack.c.l.b16 %v475
  %v515 = vunpack.c.l.b16 %v476
  %v516 = vunpack.c.l.b16 %v477
  %v517 = vunpack.c.l.b16 %v478
  %v518 = vunpack.c.l.b16 %v479
  %v519 = vunpack.c.l.b16 %v480
  %v520 = vpack.c.b16 %v505, %v504
  %v521 = vpack.c.b16 %v507, %v506
  %v522 = vpack.c.b16 %v509, %v508
  %v523 = vpack.c.b16 %v511, %v510
  %v524 = vpack.c.b16 %v513, %v512
  %v525 = vpack.c.b16 %v515, %v514
  %v526 = vpack.c.b16 %v517, %v516
  %v527 = vpack.c.b16 %v519, %v518
  %536 = vmatprep.subr.bf16.mxu0 0
  %537 = vmatpush1.bf16.msra.mxu0 %v520
  %538 = vmatprep.subr.bf16.mxu0 0
  %539 = vmatpush1.bf16.msra.mxu0 %v521
  %540 = vmatprep.subr.bf16.mxu0 0
  %541 = vmatpush1.bf16.msra.mxu0 %v522
  %542 = vmatprep.subr.bf16.mxu0 0
  %543 = vmatpush1.bf16.msra.mxu0 %v523
  %544 = vmatprep.subr.bf16.mxu0 0
  %545 = vmatpush1.bf16.msra.mxu0 %v524
  %546 = vmatprep.subr.bf16.mxu0 0
  %547 = vmatpush1.bf16.msra.mxu0 %v525
  %548 = vmatprep.subr.bf16.mxu0 0
  %549 = vmatpush1.bf16.msra.mxu0 %v526
  %550 = vmatprep.subr.bf16.mxu0 0
  %551 = vmatpush1.bf16.msra.mxu0 %v527
  %552 = vmatprep.subr.bf16.mxu0 0
  %553 = vmatpush1.bf16.msra.mxu0 0
  %554 = vmatprep.subr.bf16.mxu0 0
  %555 = vmatpush1.bf16.msra.mxu0 0
  %556 = vmatprep.subr.bf16.mxu0 0
  %557 = vmatpush1.bf16.msra.mxu0 0
  %558 = vmatprep.subr.bf16.mxu0 0
  %559 = vmatpush1.bf16.msra.mxu0 0
  %560 = vmatprep.subr.bf16.mxu0 0
  %561 = vmatpush1.bf16.msra.mxu0 0
  %562 = vmatprep.subr.bf16.mxu0 0
  %563 = vmatpush1.bf16.msra.mxu0 0
  %564 = vmatprep.subr.bf16.mxu0 0
  %565 = vmatpush1.bf16.msra.mxu0 0
  %566 = vmatprep.subr.bf16.mxu0 0
  %567 = vmatpush1.bf16.msra.mxu0 0
  %568 = vmatprep.mubr.bf16.mxu0 0
  %569 = vmatmul.mubr.bf16.gmra.mrb[0].mxu0 %v464
  %v570 = vpop.f32.mrb[0].mxu0
  %v571 = vadd.f32 %v486, %v570
  %v572 = vpop.f32.mrb[0].mxu0
  %v573 = vpop.f32.mrb[0].mxu0
  %v574 = vpop.f32.mrb[0].mxu0
  %575 = vdwg.mxu0
  %576 = vst [vmem:[%s13] sm:$0xff] %v571
  // Predicated region
  $region54: #{mlp_forward.1} parent=0 // pred_check
    _
  $region55: #{mlp_forward.1} parent=0 // pred_check_branch
    %578 = sbr.rel (0) target = $region57
  $region56: #{mlp_forward.1} parent=0 // pred_region
    _
  $region57: #{mlp_forward.1} parent=0 // pred_fallthru
    _
  // Predicated region
  $region58: #{mlp_forward.1} parent=0 // pred_check
    _
  $region59: #{mlp_forward.1} parent=0 // pred_check_branch
    %580 = sbr.rel (0) target = $region61
  $region60: #{mlp_forward.1} parent=0 // pred_region
    _
  $region61: #{mlp_forward.1} parent=0 // pred_fallthru
    _

</llo_original>
